<compile_context>
chip_gen: v6e
topology: v6e:2x2x1
jax: 0.10.0
libtpu: 0.0.40
codegen_flags: <defaults>
</compile_context>

<pallas_src>
import functools
import math

import jax
import jax.numpy as jnp
from jax.experimental import pallas as pl
from jax.experimental.pallas import tpu as pltpu

_LANE = 128
# 4096x128 rows: f32/C=2 preds block = 4 MiB, labels 2 MiB -> 12 MiB
# double-buffered, under the explicit 32 MiB VMEM limit on every generation.
_BR_TARGET = 4096
_VMEM_LIMIT = 32 * 1024 * 1024


def _recall_partial_kernel(ignore_idx, logit_t, single_class, rows_valid,
                           block_rows, need_row_mask,
                           labels_ref, preds_ref, out_ref):
    """One (BR, 128) tile -> exact int32 partial TP / FN counts."""
    labels = labels_ref[0]                     # (BR, 128), native dtype
    if single_class:
        # sigmoid(x) > t  <=>  x > logit(t); logit_t baked in statically.
        # Upcast to f32 in-register (free VPU work hidden under DMA).
        pred_true = preds_ref[0, 0].astype(jnp.float32) > jnp.float32(logit_t)
    else:
        # argmax over 2 classes; ties -> class 0, exactly like torch.max.
        pred_true = preds_ref[0, 1] > preds_ref[0, 0]

    # positives that count: label == 1 and not ignored.
    pos = (labels != ignore_idx) & (labels == 1)
    if need_row_mask:
        # Last R-block may overrun the array; mask rows beyond the true extent.
        row = (jax.lax.broadcasted_iota(jnp.int32, (block_rows, _LANE), 0)
               + pl.program_id(1) * block_rows)
        pos = pos & (row < rows_valid)

    tp = jnp.sum((pos & pred_true).astype(jnp.int32))
    fn = jnp.sum(pos.astype(jnp.int32)) - tp

    # Write the two scalars into a full, unmasked (8,128) output tile.
    sub = jax.lax.broadcasted_iota(jnp.int32, (8, _LANE), 0)
    lane = jax.lax.broadcasted_iota(jnp.int32, (8, _LANE), 1)
    tile = jnp.where((sub == 0) & (lane == 0), tp, 0)
    tile = jnp.where((sub == 0) & (lane == 1), fn, tile)
    out_ref[0, 0] = tile


def _counts_plain(labels2, preds3, ignore_idx, threshold, single_class):
    """Plain-JAX TP/FN counts for a tiny tail slab. labels2:(N,T), preds3:(N,C,T)."""
    if single_class:
        pred_true = jax.nn.sigmoid(preds3[:, 0].astype(jnp.float32)) > threshold
    else:
        pred_true = preds3[:, 1] > preds3[:, 0]
    pos = (labels2 != ignore_idx) & (labels2 == 1)
    tp = jnp.sum((pos & pred_true).astype(jnp.int32))
    fn = jnp.sum(pos.astype(jnp.int32)) - tp
    return tp, fn


def _recall_counts(labels, preds, ignore_idx, threshold):
    """Returns (tp, fn) as float32 device scalars."""
    N = labels.shape[0]
    C = preds.shape[1]
    M = 1
    for d in labels.shape[1:]:
        M *= d
    single_class = (C == 1)

    labels2 = labels.reshape(N, M)
    preds3 = preds.reshape(N, C, M)

    # Keep native dtypes on the hot path; only normalise dtypes the kernel
    # can't compare correctly / efficiently (unsigned can't hold ignore_idx=-1,
    # 64-bit is unsupported/wasteful on TPU).
    if (labels2.dtype == jnp.bool_
            or jnp.issubdtype(labels2.dtype, jnp.unsignedinteger)
            or labels2.dtype.itemsize > 4):
        labels2 = labels2.astype(jnp.int32)
    if preds3.dtype.itemsize > 4:
        preds3 = preds3.astype(jnp.float32)

    if single_class:
        # Guard logit() domain; strict '>' on logits vs sigmoid differs only by
        # rounding at the exact threshold (acceptable for a metric).
        t = min(max(float(threshold), 1e-7), 1.0 - 1e-7)
        logit_t = float(math.log(t / (1.0 - t)))
    else:
        logit_t = 0.0

    bulk_rows = M // _LANE
    bulk = bulk_rows * _LANE

    tp = jnp.zeros((), jnp.int32)
    fn = jnp.zeros((), jnp.int32)

    if bulk_rows > 0:
        if bulk == M:
            # Common case: contiguity-preserving reshapes, zero extra HBM traffic.
            labels3 = labels2.reshape(N, bulk_rows, _LANE)
            preds4 = preds3.reshape(N, C, bulk_rows, _LANE)
        else:
            # TODO(synk): this bulk slice still copies the inputs; only hit when
            # H*W is not a multiple of 128 (the tail is handled in plain JAX).
            labels3 = labels2[:, :bulk].reshape(N, bulk_rows, _LANE)
            preds4 = preds3[:, :, :bulk].reshape(N, C, bulk_rows, _LANE)

        R = bulk_rows
        BR = min(_BR_TARGET, R)            # 4096 is a multiple of 32 -> OK for bf16/int8 packing
        grid_r = pl.cdiv(R, BR)
        need_row_mask = (grid_r * BR != R)

        kernel = functools.partial(
            _recall_partial_kernel, ignore_idx, logit_t, single_class,
            R, BR, need_row_mask)

        out_bytes = N * grid_r * 8 * _LANE * 4
        in_bytes = (labels3.size * labels3.dtype.itemsize
                    + preds4.size * preds4.dtype.itemsize)

        out = pl.pallas_call(
            kernel,
            grid=(N, grid_r),
            in_specs=[
                pl.BlockSpec((1, BR, _LANE), lambda n, j: (n, j, 0)),
                pl.BlockSpec((1, C, BR, _LANE), lambda n, j: (n, 0, j, 0)),
            ],
            out_specs=pl.BlockSpec((1, 1, 8, _LANE), lambda n, j: (n, j, 0, 0)),
            out_shape=jax.ShapeDtypeStruct((N, grid_r, 8, _LANE), jnp.int32),
            compiler_params=pltpu.CompilerParams(
                dimension_semantics=("parallel", "parallel"),
                vmem_limit_bytes=_VMEM_LIMIT),
            cost_estimate=pl.CostEstimate(
                flops=6 * N * R * _LANE,
                transcendentals=0,
                bytes_accessed=in_bytes + out_bytes),
        )(labels3, preds4)

        # Only [.., 0, 0] / [.., 0, 1] are nonzero.
        sums = out[:, :, 0, :2].sum(axis=(0, 1))
        tp = tp + sums[0]
        fn = fn + sums[1]

    if bulk != M:
        # Tiny tail: N x (M mod 128) elements, plain JAX.
        tp_t, fn_t = _counts_plain(labels2[:, bulk:], preds3[:, :, bulk:],
                                   ignore_idx, threshold, single_class)
        tp = tp + tp_t
        fn = fn + fn_t

    return tp.astype(jnp.float32), fn.astype(jnp.float32)


class Recall:
    """Recall metric matching the PyTorch module (default-weights path)."""

    def __init__(self, dim=1, ignore_idx=-1, threshold=0.5):
        self.total = jnp.zeros((), jnp.float32)
        self.count = jnp.zeros((), jnp.float32)
        self._dim = dim
        self._ignore_idx = ignore_idx
        self._threshold = threshold

    def forward(self, labels, preds, weights=None):
        # TODO(synk): explicit `weights` tensor argument not wired into the
        # kernel; only the default (labels != ignore_idx) path is implemented.
        assert weights is None, "only the default weights path is implemented"
        assert self._dim == 1, "class dim must be 1 (NCHW layout)"
        C = preds.shape[self._dim]
        assert C in (1, 2), "recall only supports 1 or 2 classes"

        tp, fn = _recall_counts(labels, preds, self._ignore_idx, self._threshold)

        cnt = tp + fn
        upd = (cnt > 0).astype(jnp.float32)       # no host sync
        self.count = self.count + upd * cnt
        self.total = self.total + upd * tp
        return self.value                          # device scalar

    @property
    def value(self):
        return self.total / self.count

    def clear(self):
        self.total = jnp.zeros((), jnp.float32)
        self.count = jnp.zeros((), jnp.float32)


def _reference_recall_counts(labels, preds, ignore_idx=-1, threshold=0.5):
    N = labels.shape[0]
    l2 = labels.reshape(N, -1)
    C = preds.shape[1]
    if C == 1:
        pred = (jax.nn.sigmoid(preds[:, 0].astype(jnp.float32)) > threshold
                ).astype(jnp.int32).reshape(N, -1)
    else:
        pred = jnp.argmax(preds, axis=1).reshape(N, -1)
    w = (l2 != ignore_idx).astype(jnp.float32)
    tp = jnp.sum(w * ((l2 == 1) & (pred == 1)).astype(jnp.float32))
    fn = jnp.sum(w * ((l2 == 1) & (pred == 0)).astype(jnp.float32))
    return tp, fn


if __name__ == "__main__":
    key = jax.random.PRNGKey(0)
    k1, k2, k3, k4, k5 = jax.random.split(key, 5)

    N, C, H, W = 2, 2, 16, 16
    preds = jax.random.normal(k1, (N, C, H, W), dtype=jnp.float32)
    # labels in {-1, 0, 1}: includes ignored entries
    labels = jax.random.randint(k2, (N, H, W), -1, 2).astype(jnp.int32)
    jax.block_until_ready(preds)
    jax.block_until_ready(labels)

    # 2-class (argmax) path, M % 128 == 0
    metric = Recall(dim=1, ignore_idx=-1, threshold=0.5)
    val = metric.forward(labels, preds)
    jax.block_until_ready(val)
    tp_r, fn_r = _reference_recall_counts(labels, preds)
    ref = float(tp_r / (tp_r + fn_r))
    assert abs(float(val) - ref) < 1e-6, (float(val), ref)

    # 1-class (sigmoid > threshold) path
    preds1 = jax.random.normal(k3, (N, 1, H, W), dtype=jnp.float32)
    metric1 = Recall(dim=1, ignore_idx=-1, threshold=0.5)
    val1 = metric1.forward(labels, preds1)
    jax.block_until_ready(val1)
    tp1, fn1 = _reference_recall_counts(labels, preds1, threshold=0.5)
    ref1 = float(tp1 / (tp1 + fn1))
    assert abs(float(val1) - ref1) < 1e-6, (float(val1), ref1)

    # 2-class path with H*W not a multiple of 128 (exercises bulk + JAX tail)
    Ho, Wo = 15, 15
    preds_o = jax.random.normal(k4, (N, C, Ho, Wo), dtype=jnp.float32)
    labels_o = jax.random.randint(k5, (N, Ho, Wo), -1, 2).astype(jnp.int32)
    metric_o = Recall(dim=1, ignore_idx=-1, threshold=0.5)
    val_o = metric_o.forward(labels_o, preds_o)
    jax.block_until_ready(val_o)
    tp_o, fn_o = _reference_recall_counts(labels_o, preds_o)
    ref_o = float(tp_o / (tp_o + fn_o))
    assert abs(float(val_o) - ref_o) < 1e-6, (float(val_o), ref_o)

    print("KERNEL_OK")
</pallas_src>

<mosaic_0001>
module attributes {stable_mosaic.version = 11 : i64} {
  func.func @_recall_partial_kernel(%arg0: i32, %arg1: i32, %arg2: memref<1x2x128xi32, #tpu.memory_space<vmem>>, %arg3: memref<1x2x2x128xf32, #tpu.memory_space<vmem>>, %arg4: memref<1x1x8x128xi32, #tpu.memory_space<vmem>>) attributes {dimension_semantics = [#tpu.dimension_semantics<parallel>, #tpu.dimension_semantics<parallel>], iteration_bounds = array<i64: 2, 1>, scalar_prefetch = 0 : i64, scratch_operands = 0 : i64, tpu.core_type = #tpu.core_type<tc>, window_params = [{transform_indices = @transform_0, window_bounds = array<i64: 1, 2, 128>}, {transform_indices = @transform_1, window_bounds = array<i64: 1, 2, 2, 128>}, {transform_indices = @transform_2, window_bounds = array<i64: 1, 1, 8, 128>}]} {
    %c0 = arith.constant 0 : index
    %c0_0 = arith.constant 0 : index
    %c0_1 = arith.constant 0 : index
    %0 = vector.load %arg2[%c0, %c0_0, %c0_1] : memref<1x2x128xi32, #tpu.memory_space<vmem>>, vector<1x2x128xi32>
    %1 = vector.shape_cast %0 : vector<1x2x128xi32> to vector<2x128xi32>
    %c0_2 = arith.constant 0 : index
    %c1 = arith.constant 1 : index
    %c0_3 = arith.constant 0 : index
    %c0_4 = arith.constant 0 : index
    %2 = vector.load %arg3[%c0_2, %c1, %c0_3, %c0_4] : memref<1x2x2x128xf32, #tpu.memory_space<vmem>>, vector<1x1x2x128xf32>
    %3 = vector.shape_cast %2 : vector<1x1x2x128xf32> to vector<2x128xf32>
    %c0_5 = arith.constant 0 : index
    %c0_6 = arith.constant 0 : index
    %c0_7 = arith.constant 0 : index
    %c0_8 = arith.constant 0 : index
    %4 = vector.load %arg3[%c0_5, %c0_6, %c0_7, %c0_8] : memref<1x2x2x128xf32, #tpu.memory_space<vmem>>, vector<1x1x2x128xf32>
    %5 = vector.shape_cast %4 : vector<1x1x2x128xf32> to vector<2x128xf32>
    %6 = arith.cmpf ogt, %3, %5 : vector<2x128xf32>
    %c-1_i32 = arith.constant -1 : i32
    %7 = vector.broadcast %c-1_i32 : i32 to vector<2x128xi32>
    %8 = arith.cmpi ne, %1, %7 : vector<2x128xi32>
    %c1_i32 = arith.constant 1 : i32
    %9 = vector.broadcast %c1_i32 : i32 to vector<2x128xi32>
    %10 = arith.cmpi eq, %1, %9 : vector<2x128xi32>
    %11 = arith.andi %8, %10 : vector<2x128xi1>
    %12 = arith.andi %11, %6 : vector<2x128xi1>
    %13 = arith.extui %12 : vector<2x128xi1> to vector<2x128xi32>
    %14 = vector.shape_cast %13 : vector<2x128xi32> to vector<1x2x128xi32>
    %cst = arith.constant dense<0> : vector<1xi32>
    %15 = vector.multi_reduction <add>, %14, %cst [1, 2] : vector<1x2x128xi32> to vector<1xi32>
    %16 = vector.shape_cast %15 : vector<1xi32> to vector<1x1x1xi32>
    %17 = vector.extract %16[0, 0, 0] : i32 from vector<1x1x1xi32>
    %18 = arith.extui %11 : vector<2x128xi1> to vector<2x128xi32>
    %19 = vector.shape_cast %18 : vector<2x128xi32> to vector<1x2x128xi32>
    %cst_9 = arith.constant dense<0> : vector<1xi32>
    %20 = vector.multi_reduction <add>, %19, %cst_9 [1, 2] : vector<1x2x128xi32> to vector<1xi32>
    %21 = vector.shape_cast %20 : vector<1xi32> to vector<1x1x1xi32>
    %22 = vector.extract %21[0, 0, 0] : i32 from vector<1x1x1xi32>
    %23 = arith.subi %22, %17 : i32
    %24 = tpu.iota {dimensions = array<i32: 0>} : vector<8x128xi32>
    %25 = tpu.iota {dimensions = array<i32: 1>} : vector<8x128xi32>
    %c0_i32 = arith.constant 0 : i32
    %26 = vector.broadcast %c0_i32 : i32 to vector<8x128xi32>
    %27 = arith.cmpi eq, %24, %26 : vector<8x128xi32>
    %c0_i32_10 = arith.constant 0 : i32
    %28 = vector.broadcast %c0_i32_10 : i32 to vector<8x128xi32>
    %29 = arith.cmpi eq, %25, %28 : vector<8x128xi32>
    %30 = arith.andi %27, %29 : vector<8x128xi1>
    %c0_i32_11 = arith.constant 0 : i32
    %31 = vector.broadcast %17 : i32 to vector<8x128xi32>
    %32 = vector.broadcast %c0_i32_11 : i32 to vector<8x128xi32>
    %33 = arith.select %30, %31, %32 : vector<8x128xi1>, vector<8x128xi32>
    %c0_i32_12 = arith.constant 0 : i32
    %34 = vector.broadcast %c0_i32_12 : i32 to vector<8x128xi32>
    %35 = arith.cmpi eq, %24, %34 : vector<8x128xi32>
    %c1_i32_13 = arith.constant 1 : i32
    %36 = vector.broadcast %c1_i32_13 : i32 to vector<8x128xi32>
    %37 = arith.cmpi eq, %25, %36 : vector<8x128xi32>
    %38 = arith.andi %35, %37 : vector<8x128xi1>
    %39 = vector.broadcast %23 : i32 to vector<8x128xi32>
    %40 = arith.select %38, %39, %33 : vector<8x128xi1>, vector<8x128xi32>
    %c0_14 = arith.constant 0 : index
    %c0_15 = arith.constant 0 : index
    %c0_16 = arith.constant 0 : index
    %c0_17 = arith.constant 0 : index
    %41 = vector.load %arg4[%c0_14, %c0_15, %c0_16, %c0_17] : memref<1x1x8x128xi32, #tpu.memory_space<vmem>>, vector<1x1x8x128xi32>
    %42 = vector.shape_cast %41 : vector<1x1x8x128xi32> to vector<8x128xi32>
    %43 = vector.shape_cast %40 : vector<8x128xi32> to vector<1x1x8x128xi32>
    tpu.vector_store %arg4[%c0_14, %c0_15, %c0_16, %c0_17], %43 {strides = array<i32>} : memref<1x1x8x128xi32, #tpu.memory_space<vmem>>, vector<1x1x8x128xi32>,
    return
  }
  func.func @transform_0(%arg0: i32, %arg1: i32) -> (i32, i32, i32) {
    %c0_i32 = arith.constant 0 : i32
    %c0_i32_0 = arith.constant 0 : i32
    return %arg0, %arg1, %c0_i32 : i32, i32, i32
  }
  func.func @transform_1(%arg0: i32, %arg1: i32) -> (i32, i32, i32, i32) {
    %c0_i32 = arith.constant 0 : i32
    %c0_i32_0 = arith.constant 0 : i32
    %c0_i32_1 = arith.constant 0 : i32
    return %arg0, %c0_i32, %arg1, %c0_i32_0 : i32, i32, i32, i32
  }
  func.func @transform_2(%arg0: i32, %arg1: i32) -> (i32, i32, i32, i32) {
    %c0_i32 = arith.constant 0 : i32
    %c0_i32_0 = arith.constant 0 : i32
    %c0_i32_1 = arith.constant 0 : i32
    return %arg0, %arg1, %c0_i32, %c0_i32_0 : i32, i32, i32, i32
  }
}

</mosaic_0001>

<llo_original>
// kernel: tpu_custom_call.1
$region0: #{tpu_custom_call.1}
  #allocation0 [shape = 'u32[]', space=smem, size = 0x4, offset = 0x4, fixed_abs, tag = 'smem constant byte address 0x4 - core index']
  #allocation1 [shape = 'u32[144,128]{1,0:T(1,128)}', space=vmem, size = 0x12000, scoped, tag = 'internal scratch']
  %s0 = inlined_call_operand.hbm [shape: s32[2,2,128], index: 0, kind: input, shape index: {}]
  %s1 = inlined_call_operand.hbm [shape: f32[2,2,2,128], index: 1, kind: input, shape index: {}]
  %s2 = inlined_call_operand.hbm [shape: s32[2,1,8,128], index: 2, kind: output, shape index: {}]
  %s3 = sld [smem:[#allocation0]]
  $region49: #{tpu_custom_call.1} parent=0
    _
  %s5 = ssub.s32 1, %s3
  %s6 = scalar_select 0, %s5, %s3
  $region1: #{tpu_custom_call.1} parent=0
    #allocation2 [shape = 'u8[2048]{0}', space=vmem, size = 0x800, scoped, tag = 'input window, operand 0']
    #allocation3 [shape = 's32[2]{0}', space=sflag, size = 0x8, scoped, tag = 'scoped memory for tpu_custom_call.1']
    #allocation4 [shape = 's32[2]{0}', space=sflag, size = 0x8, scoped, tag = 'scoped memory for tpu_custom_call.1']
    #allocation5 [shape = 'u8[4096]{0}', space=vmem, size = 0x1000, scoped, tag = 'input window, operand 1']
    #allocation6 [shape = 's32[2]{0}', space=sflag, size = 0x8, scoped, tag = 'scoped memory for tpu_custom_call.1']
    #allocation7 [shape = 'u8[8192]{0}', space=vmem, size = 0x2000, scoped, tag = 'output window, operand 0']
    %7 = vsyncpa [#allocation3], 0
    %s8 = scalar_lea.sflag [#allocation3], 1
    %9 = vsyncpa %s8, 0
    %10 = vsyncpa [#allocation6], 0
    %s11 = scalar_lea.sflag [#allocation6], 1
    %12 = vsyncpa %s11, 0
    %13 = vsyncpa [#allocation4], 0
    %s14 = scalar_lea.sflag [#allocation4], 1
    %15 = vsyncpa %s14, 0
    loop: start=0, step=1, limit=4
    $region2: #{tpu_custom_call.1} parent=1 // loop_pre_header
      _
    $region3: #{tpu_custom_call.1} parent=1 // loop_header
      %s17 = sphi 0, %s21
      %p18 = scmp.ge.s32.totalorder %s17, 4
      %s24 = sphi 0, %s36
      %s25 = sphi 0, %s32
      %s26 = sphi 0, %s24
      %s27 = sphi 0, %s25
      %s28 = sphi 0, %s26
      %s29 = sphi 0, %s27
      %s41 = sphi 0, %s43
      %s44 = sphi 0, %s41
      %s45 = sphi 0, %s44
      %s61 = sphi 0, %s45
      %s69 = sphi 0, %s71
      %s72 = sphi 0, %s69
      %s73 = sphi 0, %s72
      %s89 = sphi 0, %s73
      %s97 = sphi 0, %s99
      %s100 = sphi 0, %s97
      %s101 = sphi 0, %s100
      %s117 = sphi 0, %s101
    $region4: #{tpu_custom_call.1} parent=1 // loop_header_branch
      %20 = sbr.rel (%p18) target = $region8
    $region5: #{tpu_custom_call.1} parent=1 // loop_body
      %s22 = ssub.s32 %s17, 1
      %s23 = ssub.s32 %s17, 2
      %s30 = sadd.s32 1, %s25
      %p31 = scmp.ge.s32.totalorder %s30, 1
      %s32 = scalar_select %p31, 0, %s30
      %s33 = sadd.s32 1, %s24
      %s34 = scalar_select %p31, %s33, %s24
      %p35 = scmp.ge.s32.totalorder %s34, 2
      %s36 = scalar_select %p35, 0, %s34
      %s37 = ssub.s32 %s24, %s36
      %s38 = ssub.s32 %s25, %s32
      %s39 = sor.u32 %s37, %s38
      %p40 = scmp.eq.s32.totalorder %s39, 0
      %s42 = sadd.s32 %s41, 1
      %s43 = scalar_select %p40, %s41, %s42
      %p46 = pneg %p40
      %p47 = scmp.eq.s32.totalorder %s17, 1
      %p48 = por %p46, %p47
      %p49 = scmp.ne.s32.totalorder %s41, %s44
      %p50 = scmp.eq.s32.totalorder %s17, 0
      %p51 = por %p49, %p50
      %p52 = scmp.ne.s32.totalorder %s41, %s44
      %p53 = scmp.eq.s32.totalorder %s22, 1
      %p54 = por %p52, %p53
      %p55 = scmp.ne.s32.totalorder %s44, %s45
      %p56 = scmp.eq.s32.totalorder %s22, 0
      %p57 = por %p55, %p56
      %p58 = scmp.ne.s32.totalorder %s44, %s45
      %p59 = scmp.eq.s32.totalorder %s23, 1
      %p60 = por %p58, %p59
      %p62 = scmp.ne.s32.totalorder %s45, %s61
      %p63 = scmp.eq.s32.totalorder %s23, 0
      %p64 = por %p62, %p63
      %s65 = ssub.s32 %s24, %s36
      %s66 = ssub.s32 %s25, %s32
      %s67 = sor.u32 %s65, %s66
      %p68 = scmp.eq.s32.totalorder %s67, 0
      %s70 = sadd.s32 %s69, 1
      %s71 = scalar_select %p68, %s69, %s70
      %p74 = pneg %p68
      %p75 = scmp.eq.s32.totalorder %s17, 1
      %p76 = por %p74, %p75
      %p77 = scmp.ne.s32.totalorder %s69, %s72
      %p78 = scmp.eq.s32.totalorder %s17, 0
      %p79 = por %p77, %p78
      %p80 = scmp.ne.s32.totalorder %s69, %s72
      %p81 = scmp.eq.s32.totalorder %s22, 1
      %p82 = por %p80, %p81
      %p83 = scmp.ne.s32.totalorder %s72, %s73
      %p84 = scmp.eq.s32.totalorder %s22, 0
      %p85 = por %p83, %p84
      %p86 = scmp.ne.s32.totalorder %s72, %s73
      %p87 = scmp.eq.s32.totalorder %s23, 1
      %p88 = por %p86, %p87
      %p90 = scmp.ne.s32.totalorder %s73, %s89
      %p91 = scmp.eq.s32.totalorder %s23, 0
      %p92 = por %p90, %p91
      %s93 = ssub.s32 %s24, %s36
      %s94 = ssub.s32 %s25, %s32
      %s95 = sor.u32 %s93, %s94
      %p96 = scmp.eq.s32.totalorder %s95, 0
      %s98 = sadd.s32 %s97, 1
      %s99 = scalar_select %p96, %s97, %s98
      %p102 = pneg %p96
      %p103 = scmp.eq.s32.totalorder %s17, 1
      %p104 = por %p102, %p103
      %p105 = scmp.ne.s32.totalorder %s97, %s100
      %p106 = scmp.eq.s32.totalorder %s17, 0
      %p107 = por %p105, %p106
      %p108 = scmp.ne.s32.totalorder %s97, %s100
      %p109 = scmp.eq.s32.totalorder %s22, 1
      %p110 = por %p108, %p109
      %p111 = scmp.ne.s32.totalorder %s100, %s101
      %p112 = scmp.eq.s32.totalorder %s22, 0
      %p113 = por %p111, %p112
      %p114 = scmp.ne.s32.totalorder %s100, %s101
      %p115 = scmp.eq.s32.totalorder %s23, 1
      %p116 = por %p114, %p115
      %p118 = scmp.ne.s32.totalorder %s101, %s117
      %p119 = scmp.eq.s32.totalorder %s23, 0
      %p120 = por %p118, %p119
      %p121 = scmp.le.s32.totalorder 1, %s17
      %p122 = scmp.lt.s32.totalorder %s17, 3
      %p123 = pnand %p121, %p122
      %p124 = pneg %p123
      // Predicated region
      $region9: #{tpu_custom_call.1} parent=5 // pred_check
        _
      $region10: #{tpu_custom_call.1} parent=5 // pred_check_branch
        %126 = sbr.rel (%p123) target = $region12
      $region11: #{tpu_custom_call.1} parent=5 // pred_region
        %s127 = ssub.s32 %s17, 1
      $region12: #{tpu_custom_call.1} parent=5 // pred_fallthru
        _
      %p128 = scmp.lt.s32.totalorder %s17, 2
      // Predicated region
      $region13: #{tpu_custom_call.1} parent=5 // pred_check
        %p129 = pneg %p128
      $region14: #{tpu_custom_call.1} parent=5 // pred_check_branch
        %131 = sbr.rel (%p129) target = $region16
      $region15: #{tpu_custom_call.1} parent=5 // pred_region
        // Predicated region
        $region17: #{tpu_custom_call.1} parent=15 // pred_check
          %p132 = pneg %p51
        $region18: #{tpu_custom_call.1} parent=15 // pred_check_branch
          %134 = sbr.rel (%p132) target = $region20
        $region19: #{tpu_custom_call.1} parent=15 // pred_region
          %s135 = sand.u32 %s41, 1
          %s136 = scalar_lea.sflag [#allocation3], %s135
          %s137 = sand.u32 %s41, 1
          %s138 = smul.addr %s137, 2
          %s139 = scalar_lea.vmem [#allocation2], %s138
          %s141 = ssub.s32 32, 32
          %142 = vsyncadd %s136, %s141
          %s143 = sadd.s32 %s25, %s24
          %s144 = smul.addr %s143, 32
          %s145 = scalar_lea.hbm %s0, %s144
          %s147 = sshll.u32 %s139, 4
          %s148 = int_to_ptr.vmem [resolvable:$true] %s147
          %150 = dma.hbm_to_vmem [thread:$0]  %s145, 32, %s148, %s136
        $region20: #{tpu_custom_call.1} parent=15 // pred_fallthru
          _
        // Predicated region
        $region21: #{tpu_custom_call.1} parent=15 // pred_check
          %p151 = pneg %p79
        $region22: #{tpu_custom_call.1} parent=15 // pred_check_branch
          %153 = sbr.rel (%p151) target = $region24
        $region23: #{tpu_custom_call.1} parent=15 // pred_region
          %s154 = sand.u32 %s69, 1
          %s155 = scalar_lea.sflag [#allocation6], %s154
          %s156 = sand.u32 %s69, 1
          %s157 = smul.addr %s156, 4
          %s158 = scalar_lea.vmem [#allocation5], %s157
          %s160 = ssub.s32 64, 64
          %161 = vsyncadd %s155, %s160
          %s162 = smul.addr %s24, 2
          %s163 = sadd.s32 %s25, %s162
          %s164 = smul.addr %s163, 32
          %s165 = scalar_lea.hbm %s1, %s164
          %s166 = sshll.u32 %s158, 4
          %s167 = int_to_ptr.vmem [resolvable:$true] %s166
          %172 = dma.hbm_to_vmem [thread:$0]  %s165, 64, %s167, %s155, 32, 32, 2
        $region24: #{tpu_custom_call.1} parent=15 // pred_fallthru
          _
      $region16: #{tpu_custom_call.1} parent=5 // pred_fallthru
        _
      %p173 = scmp.le.s32.totalorder 1, %s17
      %p174 = scmp.lt.s32.totalorder %s17, 3
      %p175 = pnand %p173, %p174
      %p176 = pneg %p175
      // Predicated region
      $region25: #{tpu_custom_call.1} parent=5 // pred_check
        _
      $region26: #{tpu_custom_call.1} parent=5 // pred_check_branch
        %178 = sbr.rel (%p175) target = $region28
      $region27: #{tpu_custom_call.1} parent=5 // pred_region
        %s179 = ssub.s32 %s17, 1
        %s180 = sand.u32 %s44, 1
        %s181 = scalar_lea.sflag [#allocation3], %s180
        %s182 = sand.u32 %s44, 1
        %s183 = smul.addr %s182, 2
        %s184 = scalar_lea.vmem [#allocation2], %s183
        // Predicated region
        $region29: #{tpu_custom_call.1} parent=27 // pred_check
          %p185 = pneg %p57
        $region30: #{tpu_custom_call.1} parent=27 // pred_check_branch
          %187 = sbr.rel (%p185) target = $region32
        $region31: #{tpu_custom_call.1} parent=27 // pred_region
          %188 = dma.done %s181, 32
        $region32: #{tpu_custom_call.1} parent=27 // pred_fallthru
          _
        %s189 = sand.u32 %s72, 1
        %s190 = scalar_lea.sflag [#allocation6], %s189
        %s191 = sand.u32 %s72, 1
        %s192 = smul.addr %s191, 4
        %s193 = scalar_lea.vmem [#allocation5], %s192
        // Predicated region
        $region33: #{tpu_custom_call.1} parent=27 // pred_check
          %p194 = pneg %p85
        $region34: #{tpu_custom_call.1} parent=27 // pred_check_branch
          %196 = sbr.rel (%p194) target = $region36
        $region35: #{tpu_custom_call.1} parent=27 // pred_region
          %197 = dma.done %s190, 64
        $region36: #{tpu_custom_call.1} parent=27 // pred_fallthru
          _
        %s198 = sand.u32 %s44, 1
        %s199 = scalar_lea.sflag [#allocation3], %s198
        %s200 = sand.u32 %s44, 1
        %s201 = smul.addr %s200, 2
        %s202 = scalar_lea.vmem [#allocation2], %s201
        %p203 = pneg %p57
        %p204 = pneg %p54
        %s205 = sand.u32 %s72, 1
        %s206 = scalar_lea.sflag [#allocation6], %s205
        %s207 = sand.u32 %s72, 1
        %s208 = smul.addr %s207, 4
        %s209 = scalar_lea.vmem [#allocation5], %s208
        %p210 = pneg %p85
        %p211 = pneg %p82
        %p212 = pneg %p113
        %p213 = pneg %p110
        %s214 = sand.u32 %s100, 1
        %s215 = scalar_lea.sflag [#allocation4], %s214
        %s216 = sand.u32 %s100, 1
        %s217 = smul.addr %s216, 8
        %s218 = scalar_lea.vmem [#allocation7], %s217
        %v219 = vld [vmem:[%s184] sm:$0x3]
        %s220 = scalar_lea.vmem %s193, 2 [#allocation5]
        %v221 = vld [vmem:[%s220] sm:$0x3]
        %v222 = vld [vmem:[%s193] sm:$0x3]
        %vm223 = vcmp.gt.f32.partialorder %v221, %v222
        %vm224 = vcmp.ne.s32.totalorder %v219, 4294967295
        %vm225 = vcmp.eq.s32.totalorder %v219, 1
        %vm226 = vmand %vm224, %vm225
        %vm227 = vmand %vm226, %vm223
        %v228 = vsel %vm227, 1, 0
        %vm229 = vcmask 1041408
        %v230 = vsel %vm229, %v228, 0
        %v231 = vand.u32 %v230, 65535
        %v232 = vshrl.u32 %v230, 16
        %v233 = vcvt.s32.f32 %v231
        %v234 = vcvt.s32.f32 %v232
        %235 = vadd.xlane.f32.xlu0 %v233
        %v236 = vpop.xlane.xlu0 %235
        %237 = vadd.xlane.f32.xlu0 %v234
        %v238 = vpop.xlane.xlu0 %237
        %v239 = vcvt.f32.s32 %v236
        %v240 = vcvt.f32.s32 %v238
        %v241 = vshll.u32 %v240, 16
        %v242 = vadd.s32 %v241, %v239
        %v243 = vrot.slane %v242, 4
        %v244 = vadd.s32 %v242, %v243
        %v245 = vrot.slane %v244, 2
        %v246 = vadd.s32 %v244, %v245
        %v247 = vrot.slane %v246, 1
        %v248 = vadd.s32 %v246, %v247
        %s249 = vtos %v248
        %v250 = vsel %vm226, 1, 0
        %v251 = vsel %vm229, %v250, 0
        %v252 = vand.u32 %v251, 65535
        %v253 = vshrl.u32 %v251, 16
        %v254 = vcvt.s32.f32 %v252
        %v255 = vcvt.s32.f32 %v253
        %256 = vadd.xlane.f32.xlu0 %v254
        %v257 = vpop.xlane.xlu0 %256
        %258 = vadd.xlane.f32.xlu0 %v255
        %v259 = vpop.xlane.xlu0 %258
        %v260 = vcvt.f32.s32 %v257
        %v261 = vcvt.f32.s32 %v259
        %v262 = vshll.u32 %v261, 16
        %v263 = vadd.s32 %v262, %v260
        %v264 = vrot.slane %v263, 4
        %v265 = vadd.s32 %v263, %v264
        %v266 = vrot.slane %v265, 2
        %v267 = vadd.s32 %v265, %v266
        %v268 = vrot.slane %v267, 1
        %v269 = vadd.s32 %v267, %v268
        %s270 = vtos %v269
        %s271 = ssub.s32 %s270, %s249
        %v272 = vlaneseq
        %v273 = vshrl.u32 %v272, 7
        %v274 = vlaneseq
        %v275 = vand.u32 %v274, 127
        %vm276 = vcmp.eq.s32.totalorder %v273, 0
        %vm277 = vcmp.eq.s32.totalorder %v275, 0
        %vm278 = vmand %vm276, %vm277
        %v279 = vstv %s249
        %v280 = vsel %vm278, %v279, 0
        %vm281 = vcmp.eq.s32.totalorder %v275, 1
        %vm282 = vmand %vm276, %vm281
        %v283 = vstv %s271
        %v284 = vsel %vm282, %v283, %v280
        %285 = vst [vmem:[%s218] sm:$0xff] %v284
        %s286 = sand.u32 %s100, 1
        %s287 = scalar_lea.sflag [#allocation4], %s286
        %s288 = sand.u32 %s100, 1
        %s289 = smul.addr %s288, 8
        %s290 = scalar_lea.vmem [#allocation7], %s289
        // Predicated region
        $region37: #{tpu_custom_call.1} parent=27 // pred_check
          %p291 = pneg %p110
        $region38: #{tpu_custom_call.1} parent=27 // pred_check_branch
          %293 = sbr.rel (%p291) target = $region40
        $region39: #{tpu_custom_call.1} parent=27 // pred_region
          %s295 = ssub.s32 128, 128
          %296 = vsyncadd %s287, %s295
          %s297 = sadd.s32 %s27, %s26
          %s298 = smul.addr %s297, 128
          %s299 = scalar_lea.hbm %s2, %s298
          %s301 = sshll.u32 %s290, 4
          %s302 = int_to_ptr.vmem [resolvable:$true] %s301
          %304 = dma.vmem_to_hbm [thread:$0]  %s302, 128, %s299, %s287
        $region40: #{tpu_custom_call.1} parent=27 // pred_fallthru
          _
      $region28: #{tpu_custom_call.1} parent=5 // pred_fallthru
        _
      %p305 = scmp.le.s32.totalorder 2, %s17
      // Predicated region
      $region41: #{tpu_custom_call.1} parent=5 // pred_check
        %p306 = pneg %p305
      $region42: #{tpu_custom_call.1} parent=5 // pred_check_branch
        %308 = sbr.rel (%p306) target = $region44
      $region43: #{tpu_custom_call.1} parent=5 // pred_region
        %s309 = ssub.s32 %s17, 2
        // Predicated region
        $region45: #{tpu_custom_call.1} parent=43 // pred_check
          %p310 = pneg %p116
        $region46: #{tpu_custom_call.1} parent=43 // pred_check_branch
          %312 = sbr.rel (%p310) target = $region48
        $region47: #{tpu_custom_call.1} parent=43 // pred_region
          %s313 = sand.u32 %s101, 1
          %s314 = scalar_lea.sflag [#allocation4], %s313
          %s315 = sand.u32 %s101, 1
          %s316 = smul.addr %s315, 8
          %s317 = scalar_lea.vmem [#allocation7], %s316
          %318 = dma.done %s314, 128
        $region48: #{tpu_custom_call.1} parent=43 // pred_fallthru
          _
      $region44: #{tpu_custom_call.1} parent=5 // pred_fallthru
        _
    $region6: #{tpu_custom_call.1} parent=1 // loop_footer
      %s21 = sadd.s32 1, %s17
    $region7: #{tpu_custom_call.1} parent=1 // loop_footer_branch
      %16 = sbr.rel target = $region3
    $region8: #{tpu_custom_call.1} parent=1 // loop_exit
      _
    %319 = vsyncpa [#allocation3], 1
    %s320 = scalar_lea.sflag [#allocation3], 1
    %321 = vsyncpa %s320, 1
    %322 = vsyncpa [#allocation6], 1
    %s323 = scalar_lea.sflag [#allocation6], 1
    %324 = vsyncpa %s323, 1
    %325 = vsyncpa [#allocation4], 1
    %s326 = scalar_lea.sflag [#allocation4], 1
    %327 = vsyncpa %s326, 1

</llo_original>
